<compile_context>
chip_gen: v6e
topology: v6e:2x2x1
jax: 0.10.0
libtpu: 0.0.40
codegen_flags: <defaults>
</compile_context>

<pallas_src>
import functools

import jax
import jax.numpy as jnp
from jax.experimental import pallas as pl
from jax.experimental.pallas import tpu as pltpu


def _choose_tb(batch, num_classes):
    """Batch-tile rows: multiple of 8, ~2 MiB of f32 compute per logits tile.

    Sized on num_classes * 4 bytes because all in-kernel temporaries are f32
    regardless of the input dtype (the DMA'd input tile itself is <= that).
    """
    target_f32_bytes = 2 * 1024 * 1024
    tb = target_f32_bytes // (num_classes * 4)
    tb = max(8, min(4096, (tb // 8) * 8))
    if batch <= 8:
        return int(batch)                 # single block == full batch dim (exempt from 8-rule)
    return int(min(tb, (batch // 8) * 8))  # keep block <= array; tail handled by cdiv grid


def _label_smoothing_kernel(logits_ref, labels_ref, out_ref, *, alpha,
                            num_classes, tb, batch):
    # logits_ref: (TB, C) input dtype; labels_ref: (TB, 1) int32;
    # out_ref:    (8, 128) f32 -- per-tile partial loss sum stored at [0, 0].
    x = logits_ref[...].astype(jnp.float32)                  # (TB, C)

    # Numerically-stable softmax pieces -- no divide, no `probs` temporary.
    m = jnp.max(x, axis=1, keepdims=True)                    # (TB, 1)
    e = jnp.exp(x - m)                                       # (TB, C)
    s = jnp.sum(e, axis=1, keepdims=True)                    # (TB, 1)
    log_s = jnp.log(s)                                       # (TB, 1)

    # log(softmax + 1e-7) = log(e + 1e-7 * s) - log(s)   (exact parity with reference)
    lpe = jnp.log(e + 1e-7 * s)                              # (TB, C)

    # Fused weighted reduction: w_c = (1-alpha)*[c==label] + alpha/C, sum_c w_c = 1,
    # so loss_row = log_s - sum_c w_c * lpe_c.
    col = jax.lax.broadcasted_iota(jnp.int32, x.shape, 1)    # (TB, C)
    labels = labels_ref[...]                                 # (TB, 1) int32
    w_hit = 1.0 - alpha + alpha / num_classes
    w_miss = alpha / num_classes
    w = jnp.where(col == labels, w_hit, w_miss)              # (TB, C)
    row_loss = log_s - jnp.sum(w * lpe, axis=1, keepdims=True)   # (TB, 1)

    # Mask out-of-range tail rows (grid = cdiv(B, TB); their logits/labels are garbage).
    if batch % tb != 0:
        row = jax.lax.broadcasted_iota(jnp.int32, (tb, 1), 0)
        valid = (pl.program_id(0) * tb + row) < batch
        row_loss = jnp.where(valid, row_loss, 0.0)

    partial = jnp.sum(row_loss, axis=0, keepdims=True)       # (1, 1)

    # Lane-dense (8, 128) output block: partial sum at [0, 0], zeros elsewhere.
    ri = jax.lax.broadcasted_iota(jnp.int32, (8, 128), 0)
    ci = jax.lax.broadcasted_iota(jnp.int32, (8, 128), 1)
    out_ref[...] = jnp.where((ri == 0) & (ci == 0), partial, 0.0)


def label_smoothing_loss(logits, labels, alpha=0.1):
    """logits: (B, C) float; labels: (B,) int class indices. Returns scalar f32 loss."""
    B, C = logits.shape
    TB = _choose_tb(B, C)
    num_tiles = pl.cdiv(B, TB)

    labels_2d = labels.astype(jnp.int32).reshape(B, 1)

    kernel = functools.partial(_label_smoothing_kernel, alpha=float(alpha),
                               num_classes=C, tb=TB, batch=B)

    partials = pl.pallas_call(
        kernel,
        out_shape=jax.ShapeDtypeStruct((num_tiles * 8, 128), jnp.float32),
        grid=(num_tiles,),
        in_specs=[
            pl.BlockSpec((TB, C), lambda i: (i, 0)),   # logits tile (full C, pipelined)
            pl.BlockSpec((TB, 1), lambda i: (i, 0)),   # labels tile
        ],
        out_specs=pl.BlockSpec((8, 128), lambda i: (i, 0)),   # per-tile partial sum
        compiler_params=pltpu.CompilerParams(
            dimension_semantics=("parallel",),
            vmem_limit_bytes=32 * 1024 * 1024,
        ),
    )(logits, labels_2d)

    # Tiny final reduction in plain JAX: only [0,0] of each tile block is non-zero.
    return jnp.sum(partials) / B


def _reference_loss(logits, labels, alpha=0.1):
    probs = jax.nn.softmax(logits.astype(jnp.float32), axis=1)
    C = probs.shape[1]
    one_hot = jax.nn.one_hot(labels, C, dtype=jnp.float32)
    smooth = one_hot * (1.0 - alpha) + alpha / C
    log_probs = jnp.log(probs + 1e-7)
    return jnp.mean(-jnp.sum(smooth * log_probs, axis=1))


if __name__ == "__main__":
    key = jax.random.PRNGKey(0)
    k1, k2, k3, k4 = jax.random.split(key, 4)

    # Case 1: small, divisible shapes.
    B, C = 8, 32
    logits = jax.random.normal(k1, (B, C), dtype=jnp.float32)
    labels = jax.random.randint(k2, (B,), 0, C, dtype=jnp.int32)
    loss = jax.block_until_ready(label_smoothing_loss(logits, labels, alpha=0.1))
    ref = _reference_loss(logits, labels, alpha=0.1)
    assert jnp.allclose(loss, ref, atol=1e-5, rtol=1e-5), (loss, ref)

    # Case 2: non-divisible batch (tail block) and non-128 class count, no padding anywhere.
    B2, C2 = 20, 40
    logits2 = jax.random.normal(k3, (B2, C2), dtype=jnp.float32)
    labels2 = jax.random.randint(k4, (B2,), 0, C2, dtype=jnp.int32)
    loss2 = jax.block_until_ready(label_smoothing_loss(logits2, labels2, alpha=0.1))
    ref2 = _reference_loss(logits2, labels2, alpha=0.1)
    assert jnp.allclose(loss2, ref2, atol=1e-5, rtol=1e-5), (loss2, ref2)

    print("KERNEL_OK")
</pallas_src>

<mosaic_0001>
module attributes {stable_mosaic.version = 11 : i64} {
  func.func @_label_smoothing_kernel(%arg0: i32, %arg1: memref<8x32xf32, #tpu.memory_space<vmem>>, %arg2: memref<8x1xi32, #tpu.memory_space<vmem>>, %arg3: memref<8x128xf32, #tpu.memory_space<vmem>>) attributes {dimension_semantics = [#tpu.dimension_semantics<parallel>], iteration_bounds = array<i64: 1>, scalar_prefetch = 0 : i64, scratch_operands = 0 : i64, tpu.core_type = #tpu.core_type<tc>, window_params = [{transform_indices = @transform_0, window_bounds = array<i64: 8, 32>}, {transform_indices = @transform_1, window_bounds = array<i64: 8, 1>}, {transform_indices = @transform_2, window_bounds = array<i64: 8, 128>}]} {
    %c0 = arith.constant 0 : index
    %c0_0 = arith.constant 0 : index
    %0 = vector.load %arg1[%c0, %c0_0] : memref<8x32xf32, #tpu.memory_space<vmem>>, vector<8x32xf32>
    %cst = arith.constant dense<0xFF800000> : vector<8xf32>
    %1 = vector.multi_reduction <maximumf>, %0, %cst [1] : vector<8x32xf32> to vector<8xf32>
    %2 = vector.shape_cast %1 : vector<8xf32> to vector<8x1xf32>
    %3 = vector.broadcast %2 : vector<8x1xf32> to vector<8x32xf32>
    %4 = arith.subf %0, %3 : vector<8x32xf32>
    %5 = math.exp %4 : vector<8x32xf32>
    %cst_1 = arith.constant dense<0.000000e+00> : vector<8xf32>
    %6 = vector.multi_reduction <add>, %5, %cst_1 [1] : vector<8x32xf32> to vector<8xf32>
    %7 = vector.shape_cast %6 : vector<8xf32> to vector<8x1xf32>
    %8 = math.log %7 : vector<8x1xf32>
    %cst_2 = arith.constant 1.000000e-07 : f32
    %9 = vector.broadcast %cst_2 : f32 to vector<8x1xf32>
    %10 = arith.mulf %9, %7 : vector<8x1xf32>
    %11 = vector.broadcast %10 : vector<8x1xf32> to vector<8x32xf32>
    %12 = arith.addf %5, %11 : vector<8x32xf32>
    %13 = math.log %12 : vector<8x32xf32>
    %14 = tpu.iota {dimensions = array<i32: 1>} : vector<8x32xi32>
    %c0_3 = arith.constant 0 : index
    %c0_4 = arith.constant 0 : index
    %15 = vector.load %arg2[%c0_3, %c0_4] : memref<8x1xi32, #tpu.memory_space<vmem>>, vector<8x1xi32>
    %16 = vector.broadcast %15 : vector<8x1xi32> to vector<8x32xi32>
    %17 = arith.cmpi eq, %14, %16 : vector<8x32xi32>
    %cst_5 = arith.constant 0.903124988 : f32
    %cst_6 = arith.constant 3.125000e-03 : f32
    %18 = vector.broadcast %cst_5 : f32 to vector<8x32xf32>
    %19 = vector.broadcast %cst_6 : f32 to vector<8x32xf32>
    %20 = arith.select %17, %18, %19 : vector<8x32xi1>, vector<8x32xf32>
    %21 = arith.mulf %20, %13 : vector<8x32xf32>
    %cst_7 = arith.constant dense<0.000000e+00> : vector<8xf32>
    %22 = vector.multi_reduction <add>, %21, %cst_7 [1] : vector<8x32xf32> to vector<8xf32>
    %23 = vector.shape_cast %22 : vector<8xf32> to vector<8x1xf32>
    %24 = arith.subf %8, %23 : vector<8x1xf32>
    %cst_8 = arith.constant dense<0.000000e+00> : vector<1xf32>
    %25 = vector.multi_reduction <add>, %24, %cst_8 [0] : vector<8x1xf32> to vector<1xf32>
    %26 = vector.shape_cast %25 : vector<1xf32> to vector<1x1xf32>
    %27 = tpu.iota {dimensions = array<i32: 0>} : vector<8x128xi32>
    %28 = tpu.iota {dimensions = array<i32: 1>} : vector<8x128xi32>
    %c0_i32 = arith.constant 0 : i32
    %29 = vector.broadcast %c0_i32 : i32 to vector<8x128xi32>
    %30 = arith.cmpi eq, %27, %29 : vector<8x128xi32>
    %c0_i32_9 = arith.constant 0 : i32
    %31 = vector.broadcast %c0_i32_9 : i32 to vector<8x128xi32>
    %32 = arith.cmpi eq, %28, %31 : vector<8x128xi32>
    %33 = arith.andi %30, %32 : vector<8x128xi1>
    %cst_10 = arith.constant 0.000000e+00 : f32
    %34 = vector.shape_cast %26 : vector<1x1xf32> to vector<1x1xf32>
    %35 = vector.broadcast %34 : vector<1x1xf32> to vector<8x128xf32>
    %36 = vector.broadcast %cst_10 : f32 to vector<8x128xf32>
    %37 = arith.select %33, %35, %36 : vector<8x128xi1>, vector<8x128xf32>
    %c0_11 = arith.constant 0 : index
    %c0_12 = arith.constant 0 : index
    %38 = vector.load %arg3[%c0_11, %c0_12] : memref<8x128xf32, #tpu.memory_space<vmem>>, vector<8x128xf32>
    tpu.vector_store %arg3[%c0_11, %c0_12], %37 {strides = array<i32>} : memref<8x128xf32, #tpu.memory_space<vmem>>, vector<8x128xf32>,
    return
  }
  func.func @transform_0(%arg0: i32) -> (i32, i32) {
    %c0_i32 = arith.constant 0 : i32
    %c0_i32_0 = arith.constant 0 : i32
    return %arg0, %c0_i32 : i32, i32
  }
  func.func @transform_1(%arg0: i32) -> (i32, i32) {
    %c0_i32 = arith.constant 0 : i32
    %c0_i32_0 = arith.constant 0 : i32
    return %arg0, %c0_i32 : i32, i32
  }
  func.func @transform_2(%arg0: i32) -> (i32, i32) {
    %c0_i32 = arith.constant 0 : i32
    %c0_i32_0 = arith.constant 0 : i32
    return %arg0, %c0_i32 : i32, i32
  }
}

</mosaic_0001>

<llo_original>
// kernel: tpu_custom_call.1
$region0: #{tpu_custom_call.1}
  #allocation0 [shape = 'u32[]', space=smem, size = 0x4, offset = 0x4, fixed_abs, tag = 'smem constant byte address 0x4 - core index']
  #allocation1 [shape = 'u32[144,128]{1,0:T(1,128)}', space=vmem, size = 0x12000, scoped, tag = 'internal scratch']
  %s0 = inlined_call_operand.vmem [shape: f32[8,32], index: 0, kind: input, shape index: {}]
  %s1 = inlined_call_operand.vmem [shape: s32[8,1], index: 1, kind: input, shape index: {}]
  %s2 = inlined_call_operand.hbm [shape: f32[8,128], index: 2, kind: output, shape index: {}]
  %s3 = sld [smem:[#allocation0]]
  $region18: #{tpu_custom_call.1} parent=0
    _
  %s5 = ssub.s32 1, %s3
  %s6 = scalar_select 0, %s5, %s3
  $region1: #{tpu_custom_call.1} parent=0
    #allocation2 [shape = 'u8[4096]{0}', space=vmem, size = 0x1000, scoped, tag = 'output window, operand 0, single buffered']
    #allocation3 [shape = 's32[1]{0}', space=sflag, size = 0x4, scoped, tag = 'scoped memory for tpu_custom_call.1']
    %7 = vsyncpa [#allocation3], 0
    // Predicated region
    $region2: #{tpu_custom_call.1} parent=1 // pred_check
      _
    $region3: #{tpu_custom_call.1} parent=1 // pred_check_branch
      %9 = sbr.rel (0) target = $region5
    $region4: #{tpu_custom_call.1} parent=1 // pred_region
      _
    $region5: #{tpu_custom_call.1} parent=1 // pred_fallthru
      _
    // Predicated region
    $region6: #{tpu_custom_call.1} parent=1 // pred_check
      _
    $region7: #{tpu_custom_call.1} parent=1 // pred_check_branch
      %11 = sbr.rel (0) target = $region9
    $region8: #{tpu_custom_call.1} parent=1 // pred_region
      _
    $region9: #{tpu_custom_call.1} parent=1 // pred_fallthru
      _
    %v12 = vld [vmem:[%s0] sm:$0xff]
    %vm13 = vcmask 261120
    %v14 = vsel %vm13, %v12, -inf
    %15 = vmax.xlane.f32.xlu0 %v14
    %v16 = vpop.xlane.xlu0 %15
    %v17 = vsub.f32 %v12, %v16
    %v18 = vmul.f32 %v17, 1.442695
    %v19 = vpow.pop %v18
    %v20 = vsel %vm13, %v19, 0.0
    %21 = vadd.xlane.f32.xlu0 %v20
    %v22 = vpop.xlane.xlu0 %21
    %v23 = vlog2.pop %v22
    %v24 = vmul.f32 %v23, 0.6931472
    %v25 = vmul.f32 %v22, 1e-07
    %v26 = vadd.f32 %v19, %v25
    %v27 = vlog2.pop %v26
    %v28 = vmul.f32 %v27, 0.6931472
    %v29 = vlaneseq
    %v30 = vand.u32 %v29, 127
    %v31 = vld [vmem:[%s1] sm:$0xff]
    %32 = vset.pattern.permute.xlu0 0
    %33 = vperm.xlu0 %32, %v31
    %v34 = vpop.permute.xlu0 %33
    %vm35 = vcmp.eq.s32.totalorder %v30, %v34
    %v36 = vsel %vm35, 0.903125, 0.003125
    %v37 = vmul.f32 %v36, %v28
    %v38 = vsel %vm13, %v37, 0.0
    %39 = vadd.xlane.f32.xlu0 %v38
    %v40 = vpop.xlane.xlu0 %39
    %v41 = vsub.f32 %v24, %v40
    %v42 = vrot.slane %v41, 4
    %v43 = vadd.f32 %v41, %v42
    %v44 = vrot.slane %v43, 2
    %v45 = vadd.f32 %v43, %v44
    %v46 = vrot.slane %v45, 1
    %v47 = vadd.f32 %v45, %v46
    %v48 = vlaneseq
    %v49 = vshrl.u32 %v48, 7
    %vm50 = vcmp.eq.s32.totalorder %v49, 0
    %vm51 = vcmp.eq.s32.totalorder %v30, 0
    %vm52 = vmand %vm50, %vm51
    %v53 = vsel %vm52, %v47, 0.0
    %54 = vst [vmem:[#allocation2] sm:$0xff] %v53
    // Predicated region
    $region10: #{tpu_custom_call.1} parent=1 // pred_check
      _
    $region11: #{tpu_custom_call.1} parent=1 // pred_check_branch
      %56 = sbr.rel (0) target = $region13
    $region12: #{tpu_custom_call.1} parent=1 // pred_region
      %s58 = ssub.s32 128, 128
      %59 = vsyncadd [#allocation3], %s58
      %s61 = sshll.u32 [#allocation2], 4
      %s62 = int_to_ptr.vmem [resolvable:$true] %s61
      %64 = dma.vmem_to_hbm [thread:$0]  %s62, 128, %s2, [#allocation3]
    $region13: #{tpu_custom_call.1} parent=1 // pred_fallthru
      _
    // Predicated region
    $region14: #{tpu_custom_call.1} parent=1 // pred_check
      _
    $region15: #{tpu_custom_call.1} parent=1 // pred_check_branch
      %66 = sbr.rel (0) target = $region17
    $region16: #{tpu_custom_call.1} parent=1 // pred_region
      %67 = dma.done [#allocation3], 128
    $region17: #{tpu_custom_call.1} parent=1 // pred_fallthru
      _
    %68 = vsyncpa [#allocation3], 1

</llo_original>
